<compile_context>
chip_gen: v5e
topology: v5e:2x2
jax: 0.10.0
libtpu: 0.0.40
codegen_flags: <defaults>
</compile_context>

<pallas_src>
import functools

import jax
import jax.numpy as jnp
from jax.experimental import pallas as pl
from jax.experimental.pallas import tpu as pltpu


def _round_up(a, b):
    return (a + b - 1) // b * b


def _ffn_kernel_single(x_ref, w1_ref, b1_ref, w2_ref, b2_ref, o_ref):
    """Single-pass: whole d_ff resident. Grid = (M/tm,).

      x_ref:  (tm, Dp)   compute dtype (bf16)
      w1_ref: (Dp, Fp)   compute dtype
      b1_ref: (1, Fp)    f32
      w2_ref: (Fp, Dp)   compute dtype
      b2_ref: (1, Dp)    f32
      o_ref:  (tm, Dp)   output dtype
    """
    h = jnp.dot(x_ref[...], w1_ref[...], preferred_element_type=jnp.float32)
    h = jnp.maximum(h + b1_ref[...], 0.0)  # bias + ReLU in f32
    # Dropout (eval mode) == identity.
    y = jnp.dot(h.astype(w2_ref.dtype), w2_ref[...],
                preferred_element_type=jnp.float32)
    o_ref[...] = (y + b2_ref[...]).astype(o_ref.dtype)


def _ffn_kernel_tiled(x_ref, w1_ref, b1_ref, w2_ref, b2_ref, o_ref, acc_ref):
    """Tiled reduction over d_ff slices. Grid = (M/tm, Fp/tff); axis 1 is reduction.

      w1_ref: (Dp, tff); b1_ref: (1, tff); w2_ref: (tff, Dp)
      acc_ref: (tm, Dp) f32 accumulator carried across the reduction axis.
    """
    k = pl.program_id(1)

    h = jnp.dot(x_ref[...], w1_ref[...], preferred_element_type=jnp.float32)
    h = jnp.maximum(h + b1_ref[...], 0.0)  # bias + ReLU in f32 (current slice only)
    # Dropout (eval mode) == identity.
    partial = jnp.dot(h.astype(w2_ref.dtype), w2_ref[...],
                      preferred_element_type=jnp.float32)

    @pl.when(k == 0)
    def _first():
        acc_ref[...] = partial          # write-through, no zero-init pass

    @pl.when(k != 0)
    def _accum():
        acc_ref[...] += partial

    @pl.when(k == pl.num_programs(1) - 1)
    def _finalize():
        # b2 added only once, in the epilogue.
        o_ref[...] = (acc_ref[...] + b2_ref[...]).astype(o_ref.dtype)


def _vmem_bytes(tm, dp, tff, cbytes, obytes):
    """Double-buffered tile footprint + scratch/intermediates, in bytes."""
    return (2 * tm * dp * cbytes        # x tiles
            + 2 * dp * tff * cbytes     # W1 tiles
            + 2 * tff * dp * cbytes     # W2 tiles
            + 2 * (tff + dp) * 4        # biases (f32)
            + 2 * tm * dp * obytes      # output tiles
            + tm * tff * 4              # f32 intermediate h
            + tm * dp * 4)              # f32 accumulator / pre-cast result


@functools.partial(jax.jit, static_argnames=("tm", "max_dff_tile", "compute_dtype"))
def feed_forward(x, w1, b1, w2, b2, *, tm=256, max_dff_tile=None,
                 compute_dtype=jnp.bfloat16):
    """x: (batch, seq, d_model) -> (batch, seq, d_model). Eval-mode FeedForward."""
    batch, seq, d_model = x.shape
    d_ff = w1.shape[1]
    out_dtype = x.dtype

    M = batch * seq
    # Row tile: large enough to fill the MXU, clamped (16-aligned for bf16 sublanes)
    # for small problems so we don't over-pad.
    tm_eff = min(tm, _round_up(M, 16))
    M_pad = _round_up(M, tm_eff)
    # Lane-dense feature dims: multiples of 128.
    Dp = _round_up(d_model, 128)

    cbytes = jnp.dtype(compute_dtype).itemsize
    obytes = jnp.dtype(out_dtype).itemsize

    # d_ff tile: start from the full width (single-pass, weights stay resident) and
    # halve until the footprint fits the VMEM budget; never below 512.
    full_ff = _round_up(d_ff, 128)
    if max_dff_tile is None:
        tff_eff = full_ff
    else:
        tff_eff = min(_round_up(max_dff_tile, 128), full_ff)
    vmem_cap = 40 * 1024 * 1024
    while (_vmem_bytes(tm_eff, Dp, tff_eff, cbytes, obytes) > vmem_cap
           and tff_eff > 512):
        tff_eff = _round_up(tff_eff // 2, 128)
    Fp = _round_up(d_ff, tff_eff)
    grid_m = M_pad // tm_eff
    grid_k = Fp // tff_eff

    # Prepare padded, bf16 MXU inputs (zero padding is mathematically inert here:
    # padded x cols x padded W1 rows contribute 0; padded d_ff cols give relu(0)=0
    # times zero W2 rows).
    x2d = jnp.pad(x.reshape(M, d_model).astype(compute_dtype),
                  ((0, M_pad - M), (0, Dp - d_model)))
    w1p = jnp.pad(w1.astype(compute_dtype), ((0, Dp - d_model), (0, Fp - d_ff)))
    w2p = jnp.pad(w2.astype(compute_dtype), ((0, Fp - d_ff), (0, Dp - d_model)))
    b1p = jnp.pad(b1.astype(jnp.float32), (0, Fp - d_ff)).reshape(1, Fp)
    b2p = jnp.pad(b2.astype(jnp.float32), (0, Dp - d_model)).reshape(1, Dp)

    est = _vmem_bytes(tm_eff, Dp, tff_eff, cbytes, obytes)
    vmem_limit = int(min(max(est * 5 // 4, 32 * 1024 * 1024), 48 * 1024 * 1024))

    if grid_k == 1:
        kernel = _ffn_kernel_single
        dim_sem = ("parallel",)
        grid_spec = pltpu.PrefetchScalarGridSpec(
            num_scalar_prefetch=0,
            grid=(grid_m,),
            in_specs=[
                pl.BlockSpec((tm_eff, Dp), lambda i: (i, 0)),   # x row tile
                pl.BlockSpec((Dp, Fp), lambda i: (0, 0)),       # W1 (resident)
                pl.BlockSpec((1, Fp), lambda i: (0, 0)),        # b1
                pl.BlockSpec((Fp, Dp), lambda i: (0, 0)),       # W2 (resident)
                pl.BlockSpec((1, Dp), lambda i: (0, 0)),        # b2
            ],
            out_specs=pl.BlockSpec((tm_eff, Dp), lambda i: (i, 0)),
        )
    else:
        kernel = _ffn_kernel_tiled
        dim_sem = ("parallel", "arbitrary")
        grid_spec = pltpu.PrefetchScalarGridSpec(
            num_scalar_prefetch=0,
            grid=(grid_m, grid_k),                              # (rows, d_ff red.)
            in_specs=[
                pl.BlockSpec((tm_eff, Dp), lambda i, k: (i, 0)),    # x row tile
                pl.BlockSpec((Dp, tff_eff), lambda i, k: (0, k)),   # W1 d_ff slice
                pl.BlockSpec((1, tff_eff), lambda i, k: (0, k)),    # b1 d_ff slice
                pl.BlockSpec((tff_eff, Dp), lambda i, k: (k, 0)),   # W2 d_ff slice
                pl.BlockSpec((1, Dp), lambda i, k: (0, 0)),         # b2 (full)
            ],
            out_specs=pl.BlockSpec((tm_eff, Dp), lambda i, k: (i, 0)),
            scratch_shapes=[pltpu.VMEM((tm_eff, Dp), jnp.float32)],
        )

    out2d = pl.pallas_call(
        kernel,
        out_shape=jax.ShapeDtypeStruct((M_pad, Dp), out_dtype),
        grid_spec=grid_spec,
        compiler_params=pltpu.CompilerParams(
            dimension_semantics=dim_sem,
            vmem_limit_bytes=vmem_limit,
        ),
    )(x2d, w1p, b1p, w2p, b2p)

    return out2d[:M, :d_model].reshape(batch, seq, d_model)


def init_params(key, d_model, d_ff, dtype=jnp.float32):
    """Deterministic init mirroring nn.Linear's uniform(-1/sqrt(fan_in), 1/sqrt(fan_in))."""
    k1, k2, k3, k4 = jax.random.split(key, 4)
    lim1 = 1.0 / (d_model ** 0.5)
    lim2 = 1.0 / (d_ff ** 0.5)
    # Stored pre-transposed vs PyTorch (out, in): here (in, out).
    w1 = jax.random.uniform(k1, (d_model, d_ff), dtype, minval=-lim1, maxval=lim1)
    b1 = jax.random.uniform(k2, (d_ff,), dtype, minval=-lim1, maxval=lim1)
    w2 = jax.random.uniform(k3, (d_ff, d_model), dtype, minval=-lim2, maxval=lim2)
    b2 = jax.random.uniform(k4, (d_model,), dtype, minval=-lim2, maxval=lim2)
    return w1, b1, w2, b2


if __name__ == "__main__":
    # Small but lane-aligned shapes consistent with the module.
    batch, seq, d_model, d_ff = 2, 8, 128, 512

    key = jax.random.PRNGKey(0)
    kx, kp = jax.random.split(key)
    x = jax.random.normal(kx, (batch, seq, d_model), jnp.float32)
    w1, b1, w2, b2 = init_params(kp, d_model, d_ff)

    # Reference 1: identical mixed precision (bf16 MXU inputs, f32 accumulation).
    xb = x.reshape(-1, d_model).astype(jnp.bfloat16)
    h_ref = jnp.maximum(
        jnp.dot(xb, w1.astype(jnp.bfloat16), preferred_element_type=jnp.float32) + b1,
        0.0)
    ref = (jnp.dot(h_ref.astype(jnp.bfloat16), w2.astype(jnp.bfloat16),
                   preferred_element_type=jnp.float32) + b2).reshape(batch, seq, d_model)
    # Reference 2 (sanity bound): full-f32 math of the PyTorch module in eval mode.
    ref_f32 = (jnp.maximum(x.reshape(-1, d_model) @ w1 + b1, 0.0) @ w2
               + b2).reshape(batch, seq, d_model)

    # Path 1: single-pass kernel (whole d_ff resident).
    out = jax.block_until_ready(feed_forward(x, w1, b1, w2, b2))
    assert out.shape == (batch, seq, d_model)
    assert jnp.allclose(out, ref, atol=2e-2, rtol=2e-2), \
        float(jnp.max(jnp.abs(out - ref)))
    assert jnp.allclose(out, ref_f32, atol=1e-1, rtol=1e-1), \
        float(jnp.max(jnp.abs(out - ref_f32)))

    # Path 2: tiled d_ff reduction (force a small d_ff tile to exercise the
    # accumulator path used for very large d_ff).
    out_t = jax.block_until_ready(feed_forward(x, w1, b1, w2, b2, max_dff_tile=128))
    assert jnp.allclose(out_t, ref, atol=2e-2, rtol=2e-2), \
        float(jnp.max(jnp.abs(out_t - ref)))

    print("KERNEL_OK")
</pallas_src>

<mosaic_0001>
module attributes {stable_mosaic.version = 11 : i64} {
  func.func @_ffn_kernel_single(%arg0: i32, %arg1: memref<16x128xbf16, #tpu.memory_space<vmem>>, %arg2: memref<128x512xbf16, #tpu.memory_space<vmem>>, %arg3: memref<1x512xf32, #tpu.memory_space<vmem>>, %arg4: memref<512x128xbf16, #tpu.memory_space<vmem>>, %arg5: memref<1x128xf32, #tpu.memory_space<vmem>>, %arg6: memref<16x128xf32, #tpu.memory_space<vmem>>) attributes {dimension_semantics = [#tpu.dimension_semantics<parallel>], iteration_bounds = array<i64: 1>, scalar_prefetch = 0 : i64, scratch_operands = 0 : i64, tpu.core_type = #tpu.core_type<tc>, window_params = [{transform_indices = @transform_0, window_bounds = array<i64: 16, 128>}, {pipeline_mode = #tpu.pipeline_mode<synchronous>, transform_indices = @transform_1, window_bounds = array<i64: 128, 512>}, {pipeline_mode = #tpu.pipeline_mode<synchronous>, transform_indices = @transform_2, window_bounds = array<i64: 1, 512>}, {pipeline_mode = #tpu.pipeline_mode<synchronous>, transform_indices = @transform_3, window_bounds = array<i64: 512, 128>}, {pipeline_mode = #tpu.pipeline_mode<synchronous>, transform_indices = @transform_4, window_bounds = array<i64: 1, 128>}, {transform_indices = @transform_5, window_bounds = array<i64: 16, 128>}]} {
    %c0 = arith.constant 0 : index
    %c0_0 = arith.constant 0 : index
    %0 = vector.load %arg1[%c0, %c0_0] : memref<16x128xbf16, #tpu.memory_space<vmem>>, vector<16x128xbf16>
    %c0_1 = arith.constant 0 : index
    %c0_2 = arith.constant 0 : index
    %1 = vector.load %arg2[%c0_1, %c0_2] : memref<128x512xbf16, #tpu.memory_space<vmem>>, vector<128x512xbf16>
    %cst = arith.constant dense<0.000000e+00> : vector<16x512xf32>
    %2 = tpu.matmul %0, %1, %cst {dimension_numbers = #tpu.dot_dimension_numbers<[1], [0], [0], [1], [0, 0, 1, 1], [], []>} : vector<16x128xbf16>, vector<128x512xbf16>, vector<16x512xf32> -> vector<16x512xf32>
    %c0_3 = arith.constant 0 : index
    %c0_4 = arith.constant 0 : index
    %3 = vector.load %arg3[%c0_3, %c0_4] : memref<1x512xf32, #tpu.memory_space<vmem>>, vector<1x512xf32>
    %4 = vector.broadcast %3 : vector<1x512xf32> to vector<16x512xf32>
    %5 = arith.addf %2, %4 : vector<16x512xf32>
    %cst_5 = arith.constant 0.000000e+00 : f32
    %6 = vector.broadcast %cst_5 : f32 to vector<16x512xf32>
    %7 = arith.maximumf %5, %6 : vector<16x512xf32>
    %8 = arith.truncf %7 : vector<16x512xf32> to vector<16x512xbf16>
    %c0_6 = arith.constant 0 : index
    %c0_7 = arith.constant 0 : index
    %9 = vector.load %arg4[%c0_6, %c0_7] : memref<512x128xbf16, #tpu.memory_space<vmem>>, vector<512x128xbf16>
    %cst_8 = arith.constant dense<0.000000e+00> : vector<16x128xf32>
    %10 = tpu.matmul %8, %9, %cst_8 {dimension_numbers = #tpu.dot_dimension_numbers<[1], [0], [0], [1], [0, 0, 1, 1], [], []>} : vector<16x512xbf16>, vector<512x128xbf16>, vector<16x128xf32> -> vector<16x128xf32>
    %c0_9 = arith.constant 0 : index
    %c0_10 = arith.constant 0 : index
    %11 = vector.load %arg5[%c0_9, %c0_10] : memref<1x128xf32, #tpu.memory_space<vmem>>, vector<1x128xf32>
    %12 = vector.broadcast %11 : vector<1x128xf32> to vector<16x128xf32>
    %13 = arith.addf %10, %12 : vector<16x128xf32>
    %c0_11 = arith.constant 0 : index
    %c0_12 = arith.constant 0 : index
    %14 = vector.load %arg6[%c0_11, %c0_12] : memref<16x128xf32, #tpu.memory_space<vmem>>, vector<16x128xf32>
    tpu.vector_store %arg6[%c0_11, %c0_12], %13 {strides = array<i32>} : memref<16x128xf32, #tpu.memory_space<vmem>>, vector<16x128xf32>,
    return
  }
  func.func @transform_0(%arg0: i32) -> (i32, i32) {
    %c0_i32 = arith.constant 0 : i32
    %c0_i32_0 = arith.constant 0 : i32
    return %arg0, %c0_i32 : i32, i32
  }
  func.func @transform_1(%arg0: i32) -> (i32, i32) {
    %c0_i32 = arith.constant 0 : i32
    %c0_i32_0 = arith.constant 0 : i32
    %c0_i32_1 = arith.constant 0 : i32
    return %c0_i32, %c0_i32_0 : i32, i32
  }
  func.func @transform_2(%arg0: i32) -> (i32, i32) {
    %c0_i32 = arith.constant 0 : i32
    %c0_i32_0 = arith.constant 0 : i32
    %c0_i32_1 = arith.constant 0 : i32
    return %c0_i32, %c0_i32_0 : i32, i32
  }
  func.func @transform_3(%arg0: i32) -> (i32, i32) {
    %c0_i32 = arith.constant 0 : i32
    %c0_i32_0 = arith.constant 0 : i32
    %c0_i32_1 = arith.constant 0 : i32
    return %c0_i32, %c0_i32_0 : i32, i32
  }
  func.func @transform_4(%arg0: i32) -> (i32, i32) {
    %c0_i32 = arith.constant 0 : i32
    %c0_i32_0 = arith.constant 0 : i32
    %c0_i32_1 = arith.constant 0 : i32
    return %c0_i32, %c0_i32_0 : i32, i32
  }
  func.func @transform_5(%arg0: i32) -> (i32, i32) {
    %c0_i32 = arith.constant 0 : i32
    %c0_i32_0 = arith.constant 0 : i32
    return %arg0, %c0_i32 : i32, i32
  }
}

</mosaic_0001>

<llo_original>
// kernel: feed_forward.1
$region0: #{feed_forward.1}
  #allocation0 [shape = 'u32[]', space=smem, size = 0x4, offset = 0x4, fixed_abs, tag = 'smem constant byte address 0x4 - core index']
  #allocation1 [shape = 'u32[72,128]{1,0:T(1,128)}', space=vmem, size = 0x9000, scoped, tag = 'internal scratch']
  %s0 = inlined_call_operand.vmem [shape: bf16[16,128], index: 0, kind: input, shape index: {}]
  %s1 = inlined_call_operand.vmem [shape: bf16[128,512], index: 1, kind: input, shape index: {}]
  %s2 = inlined_call_operand.vmem [shape: f32[1,512], index: 2, kind: input, shape index: {}]
  %s3 = inlined_call_operand.vmem [shape: bf16[512,128], index: 3, kind: input, shape index: {}]
  %s4 = inlined_call_operand.vmem [shape: f32[1,128], index: 4, kind: input, shape index: {}]
  %s5 = inlined_call_operand.hbm [shape: f32[16,128], index: 5, kind: output, shape index: {}]
  %s6 = sld [smem:[#allocation0]]
  $region30: #{feed_forward.1} parent=0
    _
  %s8 = ssub.s32 1, %s6
  %s9 = scalar_select 0, %s8, %s6
  $region1: #{feed_forward.1} parent=0
    #allocation2 [shape = 'u8[8192]{0}', space=vmem, size = 0x2000, scoped, tag = 'output window, operand 0, single buffered']
    #allocation3 [shape = 's32[1]{0}', space=sflag, size = 0x4, scoped, tag = 'scoped memory for feed_forward.1']
    %10 = vsyncpa [#allocation3], 0
    // Predicated region
    $region2: #{feed_forward.1} parent=1 // pred_check
      _
    $region3: #{feed_forward.1} parent=1 // pred_check_branch
      %12 = sbr.rel (0) target = $region5
    $region4: #{feed_forward.1} parent=1 // pred_region
      _
    $region5: #{feed_forward.1} parent=1 // pred_fallthru
      _
    // Predicated region
    $region6: #{feed_forward.1} parent=1 // pred_check
      _
    $region7: #{feed_forward.1} parent=1 // pred_check_branch
      %14 = sbr.rel (0) target = $region9
    $region8: #{feed_forward.1} parent=1 // pred_region
      _
    $region9: #{feed_forward.1} parent=1 // pred_fallthru
      _
    // Predicated region
    $region10: #{feed_forward.1} parent=1 // pred_check
      _
    $region11: #{feed_forward.1} parent=1 // pred_check_branch
      %16 = sbr.rel (0) target = $region13
    $region12: #{feed_forward.1} parent=1 // pred_region
      _
    $region13: #{feed_forward.1} parent=1 // pred_fallthru
      _
    // Predicated region
    $region14: #{feed_forward.1} parent=1 // pred_check
      _
    $region15: #{feed_forward.1} parent=1 // pred_check_branch
      %18 = sbr.rel (0) target = $region17
    $region16: #{feed_forward.1} parent=1 // pred_region
      _
    $region17: #{feed_forward.1} parent=1 // pred_fallthru
      _
    // Predicated region
    $region18: #{feed_forward.1} parent=1 // pred_check
      _
    $region19: #{feed_forward.1} parent=1 // pred_check_branch
      %20 = sbr.rel (0) target = $region21
    $region20: #{feed_forward.1} parent=1 // pred_region
      _
    $region21: #{feed_forward.1} parent=1 // pred_fallthru
      _
    %v21 = vld [vmem:[%s0] sm:$0xf]
    %v22 = vld [vmem:[%s0 + $0x4] sm:$0xf]
    %v23 = vld [vmem:[%s1] sm:$0xff]
    %v24 = vld [vmem:[%s1 + $0x8] sm:$0xff]
    %v25 = vld [vmem:[%s1 + $0x10] sm:$0xff]
    %v26 = vld [vmem:[%s1 + $0x18] sm:$0xff]
    %v27 = vld [vmem:[%s1 + $0x20] sm:$0xff]
    %v28 = vld [vmem:[%s1 + $0x28] sm:$0xff]
    %v29 = vld [vmem:[%s1 + $0x30] sm:$0xff]
    %v30 = vld [vmem:[%s1 + $0x38] sm:$0xff]
    %v31 = vld [vmem:[%s1 + $0x40] sm:$0xff]
    %v32 = vld [vmem:[%s1 + $0x48] sm:$0xff]
    %v33 = vld [vmem:[%s1 + $0x50] sm:$0xff]
    %v34 = vld [vmem:[%s1 + $0x58] sm:$0xff]
    %v35 = vld [vmem:[%s1 + $0x60] sm:$0xff]
    %v36 = vld [vmem:[%s1 + $0x68] sm:$0xff]
    %v37 = vld [vmem:[%s1 + $0x70] sm:$0xff]
    %v38 = vld [vmem:[%s1 + $0x78] sm:$0xff]
    %v39 = vld [vmem:[%s1 + $0x80] sm:$0xff]
    %v40 = vld [vmem:[%s1 + $0x88] sm:$0xff]
    %v41 = vld [vmem:[%s1 + $0x90] sm:$0xff]
    %v42 = vld [vmem:[%s1 + $0x98] sm:$0xff]
    %v43 = vld [vmem:[%s1 + $0xa0] sm:$0xff]
    %v44 = vld [vmem:[%s1 + $0xa8] sm:$0xff]
    %v45 = vld [vmem:[%s1 + $0xb0] sm:$0xff]
    %v46 = vld [vmem:[%s1 + $0xb8] sm:$0xff]
    %v47 = vld [vmem:[%s1 + $0xc0] sm:$0xff]
    %v48 = vld [vmem:[%s1 + $0xc8] sm:$0xff]
    %v49 = vld [vmem:[%s1 + $0xd0] sm:$0xff]
    %v50 = vld [vmem:[%s1 + $0xd8] sm:$0xff]
    %v51 = vld [vmem:[%s1 + $0xe0] sm:$0xff]
    %v52 = vld [vmem:[%s1 + $0xe8] sm:$0xff]
    %v53 = vld [vmem:[%s1 + $0xf0] sm:$0xff]
    %v54 = vld [vmem:[%s1 + $0xf8] sm:$0xff]
    %v55 = vld [vmem:[%s2] sm:$0xf]
    %v57 = vperm.slane %v55, 0
    %v58 = vperm.slane %v55, 1
    %v59 = vperm.slane %v55, 2
    %v60 = vperm.slane %v55, 3
    %v67 = vunpack.c.l.b16 %v21
    %v68 = vunpack.c.l.b16 %v22
    %v69 = vpack.c.b16 %v68, %v67
    %v103 = vunpack.c.l.b16 %v23
    %v104 = vunpack.c.h.b16 %v23
    %v105 = vunpack.c.l.b16 %v24
    %v106 = vunpack.c.h.b16 %v24
    %v107 = vunpack.c.l.b16 %v25
    %v108 = vunpack.c.h.b16 %v25
    %v109 = vunpack.c.l.b16 %v26
    %v110 = vunpack.c.h.b16 %v26
    %v111 = vunpack.c.l.b16 %v27
    %v112 = vunpack.c.h.b16 %v27
    %v113 = vunpack.c.l.b16 %v28
    %v114 = vunpack.c.h.b16 %v28
    %v115 = vunpack.c.l.b16 %v29
    %v116 = vunpack.c.h.b16 %v29
    %v117 = vunpack.c.l.b16 %v30
    %v118 = vunpack.c.h.b16 %v30
    %v119 = vunpack.c.l.b16 %v31
    %v120 = vunpack.c.h.b16 %v31
    %v121 = vunpack.c.l.b16 %v32
    %v122 = vunpack.c.h.b16 %v32
    %v123 = vunpack.c.l.b16 %v33
    %v124 = vunpack.c.h.b16 %v33
    %v125 = vunpack.c.l.b16 %v34
    %v126 = vunpack.c.h.b16 %v34
    %v127 = vunpack.c.l.b16 %v35
    %v128 = vunpack.c.h.b16 %v35
    %v129 = vunpack.c.l.b16 %v36
    %v130 = vunpack.c.h.b16 %v36
    %v131 = vunpack.c.l.b16 %v37
    %v132 = vunpack.c.h.b16 %v37
    %v133 = vunpack.c.l.b16 %v38
    %v134 = vunpack.c.h.b16 %v38
    %v135 = vunpack.c.l.b16 %v39
    %v136 = vunpack.c.h.b16 %v39
    %v137 = vunpack.c.l.b16 %v40
    %v138 = vunpack.c.h.b16 %v40
    %v139 = vunpack.c.l.b16 %v41
    %v140 = vunpack.c.h.b16 %v41
    %v141 = vunpack.c.l.b16 %v42
    %v142 = vunpack.c.h.b16 %v42
    %v143 = vunpack.c.l.b16 %v43
    %v144 = vunpack.c.h.b16 %v43
    %v145 = vunpack.c.l.b16 %v44
    %v146 = vunpack.c.h.b16 %v44
    %v147 = vunpack.c.l.b16 %v45
    %v148 = vunpack.c.h.b16 %v45
    %v149 = vunpack.c.l.b16 %v46
    %v150 = vunpack.c.h.b16 %v46
    %v151 = vunpack.c.l.b16 %v47
    %v152 = vunpack.c.h.b16 %v47
    %v153 = vunpack.c.l.b16 %v48
    %v154 = vunpack.c.h.b16 %v48
    %v155 = vunpack.c.l.b16 %v49
    %v156 = vunpack.c.h.b16 %v49
    %v157 = vunpack.c.l.b16 %v50
    %v158 = vunpack.c.h.b16 %v50
    %v159 = vunpack.c.l.b16 %v51
    %v160 = vunpack.c.h.b16 %v51
    %v161 = vunpack.c.l.b16 %v52
    %v162 = vunpack.c.h.b16 %v52
    %v163 = vunpack.c.l.b16 %v53
    %v164 = vunpack.c.h.b16 %v53
    %v165 = vunpack.c.l.b16 %v54
    %v166 = vunpack.c.h.b16 %v54
    %v167 = vpack.c.b16 %v107, %v103
    %v168 = vpack.c.b16 %v108, %v104
    %v169 = vpack.c.b16 %v109, %v105
    %v170 = vpack.c.b16 %v110, %v106
    %v171 = vpack.c.b16 %v115, %v111
    %v172 = vpack.c.b16 %v116, %v112
    %v173 = vpack.c.b16 %v117, %v113
    %v174 = vpack.c.b16 %v118, %v114
    %v175 = vpack.c.b16 %v123, %v119
    %v176 = vpack.c.b16 %v124, %v120
    %v177 = vpack.c.b16 %v125, %v121
    %v178 = vpack.c.b16 %v126, %v122
    %v179 = vpack.c.b16 %v131, %v127
    %v180 = vpack.c.b16 %v132, %v128
    %v181 = vpack.c.b16 %v133, %v129
    %v182 = vpack.c.b16 %v134, %v130
    %v183 = vpack.c.b16 %v139, %v135
    %v184 = vpack.c.b16 %v140, %v136
    %v185 = vpack.c.b16 %v141, %v137
    %v186 = vpack.c.b16 %v142, %v138
    %v187 = vpack.c.b16 %v147, %v143
    %v188 = vpack.c.b16 %v148, %v144
    %v189 = vpack.c.b16 %v149, %v145
    %v190 = vpack.c.b16 %v150, %v146
    %v191 = vpack.c.b16 %v155, %v151
    %v192 = vpack.c.b16 %v156, %v152
    %v193 = vpack.c.b16 %v157, %v153
    %v194 = vpack.c.b16 %v158, %v154
    %v195 = vpack.c.b16 %v163, %v159
    %v196 = vpack.c.b16 %v164, %v160
    %v197 = vpack.c.b16 %v165, %v161
    %v198 = vpack.c.b16 %v166, %v162
    %231 = vmatpush.bf16.msra.mxu0 %v195
    %232 = vmatpush.bf16.msra.mxu0 %v191
    %233 = vmatpush.bf16.msra.mxu0 %v187
    %234 = vmatpush.bf16.msra.mxu0 %v183
    %235 = vmatpush.bf16.msra.mxu0 %v179
    %236 = vmatpush.bf16.msra.mxu0 %v175
    %237 = vmatpush.bf16.msra.mxu0 %v171
    %238 = vmatpush.bf16.msra.mxu0 %v167
    %239 = vmatmul.bf16.gmra.mxu0 %v69
    %v240 = vpop.f32.mrf.mxu0
    %v241 = vadd.f32 %v57, %v240
    %v242 = vpop.f32.mrf.mxu0
    %v243 = vadd.f32 %v57, %v242
    %244 = vdwg.mxu0
    %245 = vmatpush.bf16.msra.mxu0 %v196
    %246 = vmatpush.bf16.msra.mxu0 %v192
    %247 = vmatpush.bf16.msra.mxu0 %v188
    %248 = vmatpush.bf16.msra.mxu0 %v184
    %249 = vmatpush.bf16.msra.mxu0 %v180
    %250 = vmatpush.bf16.msra.mxu0 %v176
    %251 = vmatpush.bf16.msra.mxu0 %v172
    %252 = vmatpush.bf16.msra.mxu0 %v168
    %253 = vmatmul.bf16.gmra.mxu0 %v69
    %v254 = vpop.f32.mrf.mxu0
    %v255 = vadd.f32 %v58, %v254
    %v256 = vpop.f32.mrf.mxu0
    %v257 = vadd.f32 %v58, %v256
    %258 = vdwg.mxu0
    %259 = vmatpush.bf16.msra.mxu0 %v197
    %260 = vmatpush.bf16.msra.mxu0 %v193
    %261 = vmatpush.bf16.msra.mxu0 %v189
    %262 = vmatpush.bf16.msra.mxu0 %v185
    %263 = vmatpush.bf16.msra.mxu0 %v181
    %264 = vmatpush.bf16.msra.mxu0 %v177
    %265 = vmatpush.bf16.msra.mxu0 %v173
    %266 = vmatpush.bf16.msra.mxu0 %v169
    %267 = vmatmul.bf16.gmra.mxu0 %v69
    %v268 = vpop.f32.mrf.mxu0
    %v269 = vadd.f32 %v59, %v268
    %v270 = vpop.f32.mrf.mxu0
    %v271 = vadd.f32 %v59, %v270
    %272 = vdwg.mxu0
    %273 = vmatpush.bf16.msra.mxu0 %v198
    %274 = vmatpush.bf16.msra.mxu0 %v194
    %275 = vmatpush.bf16.msra.mxu0 %v190
    %276 = vmatpush.bf16.msra.mxu0 %v186
    %277 = vmatpush.bf16.msra.mxu0 %v182
    %278 = vmatpush.bf16.msra.mxu0 %v178
    %279 = vmatpush.bf16.msra.mxu0 %v174
    %280 = vmatpush.bf16.msra.mxu0 %v170
    %281 = vmatmul.bf16.gmra.mxu0 %v69
    %v282 = vpop.f32.mrf.mxu0
    %v283 = vadd.f32 %v60, %v282
    %v284 = vpop.f32.mrf.mxu0
    %v285 = vadd.f32 %v60, %v284
    %286 = vdwg.mxu0
    %v287 = vmax.f32 %v241, 0.0
    %v288 = vmax.f32 %v255, 0.0
    %v289 = vmax.f32 %v269, 0.0
    %v290 = vmax.f32 %v283, 0.0
    %v291 = vmax.f32 %v243, 0.0
    %v292 = vmax.f32 %v257, 0.0
    %v293 = vmax.f32 %v271, 0.0
    %v294 = vmax.f32 %v285, 0.0
    %v295 = vpack.c.bf16 %v291, %v287
    %v296 = vpack.c.bf16 %v292, %v288
    %v297 = vpack.c.bf16 %v293, %v289
    %v298 = vpack.c.bf16 %v294, %v290
    %v299 = vld [vmem:[%s3] sm:$0xf]
    %v300 = vld [vmem:[%s3 + $0x4] sm:$0xf]
    %v301 = vld [vmem:[%s3 + $0x8] sm:$0xf]
    %v302 = vld [vmem:[%s3 + $0xc] sm:$0xf]
    %v303 = vld [vmem:[%s3 + $0x10] sm:$0xf]
    %v304 = vld [vmem:[%s3 + $0x14] sm:$0xf]
    %v305 = vld [vmem:[%s3 + $0x18] sm:$0xf]
    %v306 = vld [vmem:[%s3 + $0x1c] sm:$0xf]
    %v307 = vld [vmem:[%s3 + $0x20] sm:$0xf]
    %v308 = vld [vmem:[%s3 + $0x24] sm:$0xf]
    %v309 = vld [vmem:[%s3 + $0x28] sm:$0xf]
    %v310 = vld [vmem:[%s3 + $0x2c] sm:$0xf]
    %v311 = vld [vmem:[%s3 + $0x30] sm:$0xf]
    %v312 = vld [vmem:[%s3 + $0x34] sm:$0xf]
    %v313 = vld [vmem:[%s3 + $0x38] sm:$0xf]
    %v314 = vld [vmem:[%s3 + $0x3c] sm:$0xf]
    %v315 = vld [vmem:[%s3 + $0x40] sm:$0xf]
    %v316 = vld [vmem:[%s3 + $0x44] sm:$0xf]
    %v317 = vld [vmem:[%s3 + $0x48] sm:$0xf]
    %v318 = vld [vmem:[%s3 + $0x4c] sm:$0xf]
    %v319 = vld [vmem:[%s3 + $0x50] sm:$0xf]
    %v320 = vld [vmem:[%s3 + $0x54] sm:$0xf]
    %v321 = vld [vmem:[%s3 + $0x58] sm:$0xf]
    %v322 = vld [vmem:[%s3 + $0x5c] sm:$0xf]
    %v323 = vld [vmem:[%s3 + $0x60] sm:$0xf]
    %v324 = vld [vmem:[%s3 + $0x64] sm:$0xf]
    %v325 = vld [vmem:[%s3 + $0x68] sm:$0xf]
    %v326 = vld [vmem:[%s3 + $0x6c] sm:$0xf]
    %v327 = vld [vmem:[%s3 + $0x70] sm:$0xf]
    %v328 = vld [vmem:[%s3 + $0x74] sm:$0xf]
    %v329 = vld [vmem:[%s3 + $0x78] sm:$0xf]
    %v330 = vld [vmem:[%s3 + $0x7c] sm:$0xf]
    %v331 = vld [vmem:[%s3 + $0x80] sm:$0xf]
    %v332 = vld [vmem:[%s3 + $0x84] sm:$0xf]
    %v333 = vld [vmem:[%s3 + $0x88] sm:$0xf]
    %v334 = vld [vmem:[%s3 + $0x8c] sm:$0xf]
    %v335 = vld [vmem:[%s3 + $0x90] sm:$0xf]
    %v336 = vld [vmem:[%s3 + $0x94] sm:$0xf]
    %v337 = vld [vmem:[%s3 + $0x98] sm:$0xf]
    %v338 = vld [vmem:[%s3 + $0x9c] sm:$0xf]
    %v339 = vld [vmem:[%s3 + $0xa0] sm:$0xf]
    %v340 = vld [vmem:[%s3 + $0xa4] sm:$0xf]
    %v341 = vld [vmem:[%s3 + $0xa8] sm:$0xf]
    %v342 = vld [vmem:[%s3 + $0xac] sm:$0xf]
    %v343 = vld [vmem:[%s3 + $0xb0] sm:$0xf]
    %v344 = vld [vmem:[%s3 + $0xb4] sm:$0xf]
    %v345 = vld [vmem:[%s3 + $0xb8] sm:$0xf]
    %v346 = vld [vmem:[%s3 + $0xbc] sm:$0xf]
    %v347 = vld [vmem:[%s3 + $0xc0] sm:$0xf]
    %v348 = vld [vmem:[%s3 + $0xc4] sm:$0xf]
    %v349 = vld [vmem:[%s3 + $0xc8] sm:$0xf]
    %v350 = vld [vmem:[%s3 + $0xcc] sm:$0xf]
    %v351 = vld [vmem:[%s3 + $0xd0] sm:$0xf]
    %v352 = vld [vmem:[%s3 + $0xd4] sm:$0xf]
    %v353 = vld [vmem:[%s3 + $0xd8] sm:$0xf]
    %v354 = vld [vmem:[%s3 + $0xdc] sm:$0xf]
    %v355 = vld [vmem:[%s3 + $0xe0] sm:$0xf]
    %v356 = vld [vmem:[%s3 + $0xe4] sm:$0xf]
    %v357 = vld [vmem:[%s3 + $0xe8] sm:$0xf]
    %v358 = vld [vmem:[%s3 + $0xec] sm:$0xf]
    %v359 = vld [vmem:[%s3 + $0xf0] sm:$0xf]
    %v360 = vld [vmem:[%s3 + $0xf4] sm:$0xf]
    %v361 = vld [vmem:[%s3 + $0xf8] sm:$0xf]
    %v362 = vld [vmem:[%s3 + $0xfc] sm:$0xf]
    %v363 = vld [vmem:[%s4] sm:$0x1]
    %v365 = vperm.slane %v363, 0
    %v431 = vunpack.c.l.b16 %v299
    %v432 = vunpack.c.l.b16 %v300
    %v433 = vunpack.c.l.b16 %v301
    %v434 = vunpack.c.l.b16 %v302
    %v435 = vunpack.c.l.b16 %v303
    %v436 = vunpack.c.l.b16 %v304
    %v437 = vunpack.c.l.b16 %v305
    %v438 = vunpack.c.l.b16 %v306
    %v439 = vunpack.c.l.b16 %v307
    %v440 = vunpack.c.l.b16 %v308
    %v441 = vunpack.c.l.b16 %v309
    %v442 = vunpack.c.l.b16 %v310
    %v443 = vunpack.c.l.b16 %v311
    %v444 = vunpack.c.l.b16 %v312
    %v445 = vunpack.c.l.b16 %v313
    %v446 = vunpack.c.l.b16 %v314
    %v447 = vunpack.c.l.b16 %v315
    %v448 = vunpack.c.l.b16 %v316
    %v449 = vunpack.c.l.b16 %v317
    %v450 = vunpack.c.l.b16 %v318
    %v451 = vunpack.c.l.b16 %v319
    %v452 = vunpack.c.l.b16 %v320
    %v453 = vunpack.c.l.b16 %v321
    %v454 = vunpack.c.l.b16 %v322
    %v455 = vunpack.c.l.b16 %v323
    %v456 = vunpack.c.l.b16 %v324
    %v457 = vunpack.c.l.b16 %v325
    %v458 = vunpack.c.l.b16 %v326
    %v459 = vunpack.c.l.b16 %v327
    %v460 = vunpack.c.l.b16 %v328
    %v461 = vunpack.c.l.b16 %v329
    %v462 = vunpack.c.l.b16 %v330
    %v463 = vunpack.c.l.b16 %v331
    %v464 = vunpack.c.l.b16 %v332
    %v465 = vunpack.c.l.b16 %v333
    %v466 = vunpack.c.l.b16 %v334
    %v467 = vunpack.c.l.b16 %v335
    %v468 = vunpack.c.l.b16 %v336
    %v469 = vunpack.c.l.b16 %v337
    %v470 = vunpack.c.l.b16 %v338
    %v471 = vunpack.c.l.b16 %v339
    %v472 = vunpack.c.l.b16 %v340
    %v473 = vunpack.c.l.b16 %v341
    %v474 = vunpack.c.l.b16 %v342
    %v475 = vunpack.c.l.b16 %v343
    %v476 = vunpack.c.l.b16 %v344
    %v477 = vunpack.c.l.b16 %v345
    %v478 = vunpack.c.l.b16 %v346
    %v479 = vunpack.c.l.b16 %v347
    %v480 = vunpack.c.l.b16 %v348
    %v481 = vunpack.c.l.b16 %v349
    %v482 = vunpack.c.l.b16 %v350
    %v483 = vunpack.c.l.b16 %v351
    %v484 = vunpack.c.l.b16 %v352
    %v485 = vunpack.c.l.b16 %v353
    %v486 = vunpack.c.l.b16 %v354
    %v487 = vunpack.c.l.b16 %v355
    %v488 = vunpack.c.l.b16 %v356
    %v489 = vunpack.c.l.b16 %v357
    %v490 = vunpack.c.l.b16 %v358
    %v491 = vunpack.c.l.b16 %v359
    %v492 = vunpack.c.l.b16 %v360
    %v493 = vunpack.c.l.b16 %v361
    %v494 = vunpack.c.l.b16 %v362
    %v495 = vpack.c.b16 %v432, %v431
    %v496 = vpack.c.b16 %v434, %v433
    %v497 = vpack.c.b16 %v436, %v435
    %v498 = vpack.c.b16 %v438, %v437
    %v499 = vpack.c.b16 %v440, %v439
    %v500 = vpack.c.b16 %v442, %v441
    %v501 = vpack.c.b16 %v444, %v443
    %v502 = vpack.c.b16 %v446, %v445
    %v503 = vpack.c.b16 %v448, %v447
    %v504 = vpack.c.b16 %v450, %v449
    %v505 = vpack.c.b16 %v452, %v451
    %v506 = vpack.c.b16 %v454, %v453
    %v507 = vpack.c.b16 %v456, %v455
    %v508 = vpack.c.b16 %v458, %v457
    %v509 = vpack.c.b16 %v460, %v459
    %v510 = vpack.c.b16 %v462, %v461
    %v511 = vpack.c.b16 %v464, %v463
    %v512 = vpack.c.b16 %v466, %v465
    %v513 = vpack.c.b16 %v468, %v467
    %v514 = vpack.c.b16 %v470, %v469
    %v515 = vpack.c.b16 %v472, %v471
    %v516 = vpack.c.b16 %v474, %v473
    %v517 = vpack.c.b16 %v476, %v475
    %v518 = vpack.c.b16 %v478, %v477
    %v519 = vpack.c.b16 %v480, %v479
    %v520 = vpack.c.b16 %v482, %v481
    %v521 = vpack.c.b16 %v484, %v483
    %v522 = vpack.c.b16 %v486, %v485
    %v523 = vpack.c.b16 %v488, %v487
    %v524 = vpack.c.b16 %v490, %v489
    %v525 = vpack.c.b16 %v492, %v491
    %v526 = vpack.c.b16 %v494, %v493
    %559 = vmatpush.bf16.msra.mxu0 %v502
    %560 = vmatpush.bf16.msra.mxu0 %v501
    %561 = vmatpush.bf16.msra.mxu0 %v500
    %562 = vmatpush.bf16.msra.mxu0 %v499
    %563 = vmatpush.bf16.msra.mxu0 %v498
    %564 = vmatpush.bf16.msra.mxu0 %v497
    %565 = vmatpush.bf16.msra.mxu0 %v496
    %566 = vmatpush.bf16.msra.mxu0 %v495
    %567 = vmatmul.bf16.gmra.mxu0 %v295
    %v568 = vpop.f32.mrf.mxu0
    %v569 = vadd.f32 %v365, %v568
    %v570 = vpop.f32.mrf.mxu0
    %v571 = vadd.f32 %v365, %v570
    %572 = vdwg.mxu0
    %573 = vmatpush.bf16.msra.mxu0 %v510
    %574 = vmatpush.bf16.msra.mxu0 %v509
    %575 = vmatpush.bf16.msra.mxu0 %v508
    %576 = vmatpush.bf16.msra.mxu0 %v507
    %577 = vmatpush.bf16.msra.mxu0 %v506
    %578 = vmatpush.bf16.msra.mxu0 %v505
    %579 = vmatpush.bf16.msra.mxu0 %v504
    %580 = vmatpush.bf16.msra.mxu0 %v503
    %581 = vmatmul.bf16.gmra.mxu0 %v296
    %v582 = vpop.f32.mrf.mxu0
    %v583 = vadd.f32 %v569, %v582
    %v584 = vpop.f32.mrf.mxu0
    %v585 = vadd.f32 %v571, %v584
    %586 = vdwg.mxu0
    %587 = vmatpush.bf16.msra.mxu0 %v518
    %588 = vmatpush.bf16.msra.mxu0 %v517
    %589 = vmatpush.bf16.msra.mxu0 %v516
    %590 = vmatpush.bf16.msra.mxu0 %v515
    %591 = vmatpush.bf16.msra.mxu0 %v514
    %592 = vmatpush.bf16.msra.mxu0 %v513
    %593 = vmatpush.bf16.msra.mxu0 %v512
    %594 = vmatpush.bf16.msra.mxu0 %v511
    %595 = vmatmul.bf16.gmra.mxu0 %v297
    %v596 = vpop.f32.mrf.mxu0
    %v597 = vadd.f32 %v583, %v596
    %v598 = vpop.f32.mrf.mxu0
    %v599 = vadd.f32 %v585, %v598
    %600 = vdwg.mxu0
    %601 = vmatpush.bf16.msra.mxu0 %v526
    %602 = vmatpush.bf16.msra.mxu0 %v525
    %603 = vmatpush.bf16.msra.mxu0 %v524
    %604 = vmatpush.bf16.msra.mxu0 %v523
    %605 = vmatpush.bf16.msra.mxu0 %v522
    %606 = vmatpush.bf16.msra.mxu0 %v521
    %607 = vmatpush.bf16.msra.mxu0 %v520
    %608 = vmatpush.bf16.msra.mxu0 %v519
    %609 = vmatmul.bf16.gmra.mxu0 %v298
    %v610 = vpop.f32.mrf.mxu0
    %v611 = vadd.f32 %v597, %v610
    %v612 = vpop.f32.mrf.mxu0
    %v613 = vadd.f32 %v599, %v612
    %614 = vdwg.mxu0
    %615 = vst [vmem:[#allocation2] sm:$0xff] %v611
    %616 = vst [vmem:[#allocation2 + $0x8] sm:$0xff] %v613
    // Predicated region
    $region22: #{feed_forward.1} parent=1 // pred_check
      _
    $region23: #{feed_forward.1} parent=1 // pred_check_branch
      %618 = sbr.rel (0) target = $region25
    $region24: #{feed_forward.1} parent=1 // pred_region
      %620 = vsyncadd [#allocation3], 0
      %s621 = sshll.u32 [#allocation2], 4
      %s622 = int_to_ptr.vmem [resolvable:$true] %s621
      %s623 = sshll.u32 %s5, 4
      %s624 = int_to_ptr.hbm [resolvable:$true] %s623
      %629 = dma.vmem_to_hbm [thread:$0]  %s622, 256, %s624, [#allocation3], 128, 128, 8
    $region25: #{feed_forward.1} parent=1 // pred_fallthru
      _
    // Predicated region
    $region26: #{feed_forward.1} parent=1 // pred_check
      _
    $region27: #{feed_forward.1} parent=1 // pred_check_branch
      %631 = sbr.rel (0) target = $region29
    $region28: #{feed_forward.1} parent=1 // pred_region
      %633 = dma.done [#allocation3], 256
    $region29: #{feed_forward.1} parent=1 // pred_fallthru
      _
    %634 = vsyncpa [#allocation3], 1

</llo_original>
